<compile_context>
chip_gen: v5e
topology: v5e:2x2
jax: 0.10.0
libtpu: 0.0.40
codegen_flags: <defaults>
</compile_context>

<pallas_src>
import jax
import jax.numpy as jnp
from jax.experimental import pallas as pl
from jax.experimental.pallas import tpu as pltpu

LANE = 128


def _round_up(n, m):
    return ((n + m - 1) // m) * m


def _disc_kernel(emb_ref, pos_ref, w1e_ref, w1p_ref, b1_ref, w2_ref, b2_ref, o_ref):
    """One batch tile of lin2(relu(lin1(cat(emb, pos)))) (eval mode)."""
    # cat(emb, pos) @ W1  ==  emb @ W1[:H] + pos @ W1[H:], so the concatenated
    # activation is never materialized in HBM. f32 -> bf16 casts are in-kernel.
    h = jnp.dot(emb_ref[...].astype(jnp.bfloat16), w1e_ref[...],
                preferred_element_type=jnp.float32)
    h = h + jnp.dot(pos_ref[...].astype(jnp.bfloat16), w1p_ref[...],
                    preferred_element_type=jnp.float32)
    h = jnp.maximum(h + b1_ref[...], 0.0)          # bias + ReLU in f32 (v5e VPU)
    # TODO(synk): training-mode dropout (p=0.5) would use pltpu.prng_* masking;
    # the module is evaluated in eval mode so dropout is the identity.
    # Second projection (hidden -> 1): f32 VPU multiply + lane reduction instead
    # of a full 128-wide MXU pass against a mostly-zero padded w2.
    y = jnp.sum(h * w2_ref[...], axis=-1, keepdims=True) + b2_ref[...]
    o_ref[...] = y.astype(o_ref.dtype)


def _choose_tile_b(B, H):
    # Per grid step we stream tile_b rows of f32 emb + pos (+ a 1-wide f32 out),
    # double-buffered; target a few MiB per step so the ~0.35us per-step
    # pipeline overhead is well amortized.
    per_row_bytes = 2 * (2 * H * 4 + 4)
    tile = (4 << 20) // max(per_row_bytes, 1)
    tile = max(256, min(4096, tile))
    if B >= 512:
        # Keep at least 2 grid steps so the "parallel" batch axis can shard
        # across both v7x TensorCores (harmless on single-TC v5e/v6e).
        tile = min(tile, -(-B // 2))
    tile = min(tile, B)
    return _round_up(max(tile, 16), 16)  # 16-row multiple: bf16 sublane packing


def _vmem_limit_bytes(tile_b, H, P_H):
    h_lanes = _round_up(H, LANE)
    act = 2 * tile_b * h_lanes * 4 * 2        # emb + pos blocks (f32, x2 buffers)
    out = tile_b * LANE * 4 * 2               # out block (lane-padded in VMEM, x2)
    wts = 2 * H * P_H * 2 * 2                 # w1_emb + w1_pos bf16 (up to 2 bufs)
    vec = 3 * 8 * P_H * 4 * 2                 # b1, w2, b2 rows (sublane-padded)
    need = act + out + wts + vec
    # ~30% headroom for compiler-internal scratch; never below the 32 MiB
    # default scoped limit, capped well below physical VMEM.
    # TODO(synk): for very large hidden sizes (w1 > ~24 MiB) add a K-tiled
    # reduction over input features instead of holding w1 fully resident (v7x).
    return int(min(max(need * 1.3, 32 << 20), 100 << 20))


def discriminator_forward(embeddings, positive, params):
    """embeddings, positive: [B, hidden_size] float32. params: see init."""
    w1e, w1p, b1, w2, b2 = (params["w1e"], params["w1p"], params["b1"],
                            params["w2"], params["b2"])
    B, H = embeddings.shape
    P_H = w1e.shape[1]

    tile_b = _choose_tile_b(B, H)
    B_pad = _round_up(B, tile_b)
    emb = embeddings.astype(jnp.float32)
    pos = positive.astype(jnp.float32)
    if B_pad != B:
        pad = ((0, B_pad - B), (0, 0))
        emb = jnp.pad(emb, pad)
        pos = jnp.pad(pos, pad)
    grid = (B_pad // tile_b,)

    # Only request single-buffering for resident weights when they are big
    # enough for the default double-buffering to hurt (VMEM pressure on v7x);
    # tiny weights keep the default pipeline mode.
    single_buf = (w1e.size + w1p.size) * 2 > (8 << 20)

    def resident(shape):
        kwargs = {}
        if single_buf:
            kwargs["pipeline_mode"] = pl.Buffered(1)
        return pl.BlockSpec(shape, lambda i: (0, 0), **kwargs)

    cost = pl.CostEstimate(
        flops=2 * B_pad * (2 * H) * P_H + 2 * B_pad * P_H,
        transcendentals=0,
        bytes_accessed=(2 * B_pad * H * 4                 # emb + pos reads (f32)
                        + (w1e.size + w1p.size) * 2       # bf16 weights
                        + (b1.size + w2.size + b2.size) * 4
                        + B_pad * 4),                     # narrow f32 output
    )

    out = pl.pallas_call(
        _disc_kernel,
        out_shape=jax.ShapeDtypeStruct((B_pad, 1), jnp.float32),
        grid=grid,
        in_specs=[
            pl.BlockSpec((tile_b, H), lambda i: (i, 0)),   # embeddings: row-blocked
            pl.BlockSpec((tile_b, H), lambda i: (i, 0)),   # positive:   row-blocked
            resident((H, P_H)),                            # w1_emb (bf16, resident)
            resident((H, P_H)),                            # w1_pos (bf16, resident)
            resident((1, P_H)),                            # b1 (f32)
            resident((1, P_H)),                            # w2 row (f32)
            resident((1, 1)),                              # b2 (f32)
        ],
        out_specs=pl.BlockSpec((tile_b, 1), lambda i: (i, 0)),
        compiler_params=pltpu.CompilerParams(
            dimension_semantics=("parallel",),
            vmem_limit_bytes=_vmem_limit_bytes(tile_b, H, P_H),
        ),
        cost_estimate=cost,
    )(emb, pos, w1e, w1p, b1, w2, b2)

    return out[:B] if B_pad != B else out


def init_discriminator_params(key, hidden_size):
    """torch.nn.Linear-style init (uniform +-1/sqrt(fan_in)).
    Kernel params: w1 split into (w1_emb, w1_pos), stored transposed
    [in_features, out_features], lane-padded bf16; b1/w2/b2 kept f32.
    Also returns unpadded f32 reference params."""
    input_size = 2 * hidden_size
    P_H = _round_up(hidden_size, LANE)
    ks = jax.random.split(key, 4)

    bound1 = 1.0 / (input_size ** 0.5)
    w1 = jax.random.uniform(ks[0], (input_size, hidden_size), jnp.float32,
                            -bound1, bound1)
    b1 = jax.random.uniform(ks[1], (hidden_size,), jnp.float32, -bound1, bound1)
    bound2 = 1.0 / (hidden_size ** 0.5)
    w2 = jax.random.uniform(ks[2], (hidden_size, 1), jnp.float32, -bound2, bound2)
    b2 = jax.random.uniform(ks[3], (1,), jnp.float32, -bound2, bound2)

    def pad_cols(m):  # (rows, hidden) -> (rows, P_H), zero-padded lanes
        return jnp.pad(m, ((0, 0), (0, P_H - hidden_size)))

    params = dict(
        w1e=pad_cols(w1[:hidden_size]).astype(jnp.bfloat16),
        w1p=pad_cols(w1[hidden_size:]).astype(jnp.bfloat16),
        b1=pad_cols(b1[None, :]),          # (1, P_H) f32
        w2=pad_cols(w2.T),                 # (1, P_H) f32 (real column as a row)
        b2=b2[None, :],                    # (1, 1) f32
    )
    ref_params = dict(w1=w1, b1=b1, w2=w2, b2=b2)
    return params, ref_params


if __name__ == "__main__":
    key = jax.random.PRNGKey(0)
    k_e, k_p, k_w = jax.random.split(key, 3)

    batch, hidden_size = 8, 32
    embeddings = jax.random.normal(k_e, (batch, hidden_size), jnp.float32)
    positive = jax.random.normal(k_p, (batch, hidden_size), jnp.float32)
    params, ref_params = init_discriminator_params(k_w, hidden_size)

    out = discriminator_forward(embeddings, positive, params)
    out = jax.block_until_ready(out)

    # Reference in plain JAX f32 (eval mode: dropout = identity).
    x = jnp.concatenate((embeddings, positive), axis=-1)
    h = jnp.maximum(x @ ref_params["w1"] + ref_params["b1"], 0.0)
    ref = h @ ref_params["w2"] + ref_params["b2"]

    assert out.shape == (batch, 1), out.shape
    # Single bf16 MXU matmul with f32 accumulation; second projection in f32.
    assert jnp.allclose(out, ref, atol=3e-2, rtol=3e-2)

    print("KERNEL_OK")
</pallas_src>

<mosaic_0001>
module attributes {stable_mosaic.version = 11 : i64} {
  func.func @_disc_kernel(%arg0: i32, %arg1: memref<16x32xf32, #tpu.memory_space<vmem>>, %arg2: memref<16x32xf32, #tpu.memory_space<vmem>>, %arg3: memref<32x128xbf16, #tpu.memory_space<vmem>>, %arg4: memref<32x128xbf16, #tpu.memory_space<vmem>>, %arg5: memref<1x128xf32, #tpu.memory_space<vmem>>, %arg6: memref<1x128xf32, #tpu.memory_space<vmem>>, %arg7: memref<1x1xf32, #tpu.memory_space<vmem>>, %arg8: memref<16x1xf32, #tpu.memory_space<vmem>>) attributes {dimension_semantics = [#tpu.dimension_semantics<parallel>], iteration_bounds = array<i64: 1>, scalar_prefetch = 0 : i64, scratch_operands = 0 : i64, tpu.core_type = #tpu.core_type<tc>, window_params = [{transform_indices = @transform_0, window_bounds = array<i64: 16, 32>}, {transform_indices = @transform_1, window_bounds = array<i64: 16, 32>}, {pipeline_mode = #tpu.pipeline_mode<synchronous>, transform_indices = @transform_2, window_bounds = array<i64: 32, 128>}, {pipeline_mode = #tpu.pipeline_mode<synchronous>, transform_indices = @transform_3, window_bounds = array<i64: 32, 128>}, {pipeline_mode = #tpu.pipeline_mode<synchronous>, transform_indices = @transform_4, window_bounds = array<i64: 1, 128>}, {pipeline_mode = #tpu.pipeline_mode<synchronous>, transform_indices = @transform_5, window_bounds = array<i64: 1, 128>}, {pipeline_mode = #tpu.pipeline_mode<synchronous>, transform_indices = @transform_6, window_bounds = array<i64: 1, 1>}, {transform_indices = @transform_7, window_bounds = array<i64: 16, 1>}]} {
    %c0 = arith.constant 0 : index
    %c0_0 = arith.constant 0 : index
    %0 = vector.load %arg1[%c0, %c0_0] : memref<16x32xf32, #tpu.memory_space<vmem>>, vector<16x32xf32>
    %1 = arith.truncf %0 : vector<16x32xf32> to vector<16x32xbf16>
    %c0_1 = arith.constant 0 : index
    %c0_2 = arith.constant 0 : index
    %2 = vector.load %arg3[%c0_1, %c0_2] : memref<32x128xbf16, #tpu.memory_space<vmem>>, vector<32x128xbf16>
    %cst = arith.constant dense<0.000000e+00> : vector<16x128xf32>
    %3 = tpu.matmul %1, %2, %cst {dimension_numbers = #tpu.dot_dimension_numbers<[1], [0], [0], [1], [0, 0, 1, 1], [], []>} : vector<16x32xbf16>, vector<32x128xbf16>, vector<16x128xf32> -> vector<16x128xf32>
    %c0_3 = arith.constant 0 : index
    %c0_4 = arith.constant 0 : index
    %4 = vector.load %arg2[%c0_3, %c0_4] : memref<16x32xf32, #tpu.memory_space<vmem>>, vector<16x32xf32>
    %5 = arith.truncf %4 : vector<16x32xf32> to vector<16x32xbf16>
    %c0_5 = arith.constant 0 : index
    %c0_6 = arith.constant 0 : index
    %6 = vector.load %arg4[%c0_5, %c0_6] : memref<32x128xbf16, #tpu.memory_space<vmem>>, vector<32x128xbf16>
    %cst_7 = arith.constant dense<0.000000e+00> : vector<16x128xf32>
    %7 = tpu.matmul %5, %6, %cst_7 {dimension_numbers = #tpu.dot_dimension_numbers<[1], [0], [0], [1], [0, 0, 1, 1], [], []>} : vector<16x32xbf16>, vector<32x128xbf16>, vector<16x128xf32> -> vector<16x128xf32>
    %8 = arith.addf %3, %7 : vector<16x128xf32>
    %c0_8 = arith.constant 0 : index
    %c0_9 = arith.constant 0 : index
    %9 = vector.load %arg5[%c0_8, %c0_9] : memref<1x128xf32, #tpu.memory_space<vmem>>, vector<1x128xf32>
    %10 = vector.broadcast %9 : vector<1x128xf32> to vector<16x128xf32>
    %11 = arith.addf %8, %10 : vector<16x128xf32>
    %cst_10 = arith.constant 0.000000e+00 : f32
    %12 = vector.broadcast %cst_10 : f32 to vector<16x128xf32>
    %13 = arith.maximumf %11, %12 : vector<16x128xf32>
    %c0_11 = arith.constant 0 : index
    %c0_12 = arith.constant 0 : index
    %14 = vector.load %arg6[%c0_11, %c0_12] : memref<1x128xf32, #tpu.memory_space<vmem>>, vector<1x128xf32>
    %15 = vector.broadcast %14 : vector<1x128xf32> to vector<16x128xf32>
    %16 = arith.mulf %13, %15 : vector<16x128xf32>
    %cst_13 = arith.constant dense<0.000000e+00> : vector<16xf32>
    %17 = vector.multi_reduction <add>, %16, %cst_13 [1] : vector<16x128xf32> to vector<16xf32>
    %18 = vector.shape_cast %17 : vector<16xf32> to vector<16x1xf32>
    %c0_14 = arith.constant 0 : index
    %c0_15 = arith.constant 0 : index
    %19 = vector.load %arg7[%c0_14, %c0_15] : memref<1x1xf32, #tpu.memory_space<vmem>>, vector<1x1xf32>
    %20 = vector.broadcast %19 : vector<1x1xf32> to vector<16x1xf32>
    %21 = arith.addf %18, %20 : vector<16x1xf32>
    %c0_16 = arith.constant 0 : index
    %c0_17 = arith.constant 0 : index
    %22 = vector.load %arg8[%c0_16, %c0_17] : memref<16x1xf32, #tpu.memory_space<vmem>>, vector<16x1xf32>
    tpu.vector_store %arg8[%c0_16, %c0_17], %21 {strides = array<i32>} : memref<16x1xf32, #tpu.memory_space<vmem>>, vector<16x1xf32>,
    return
  }
  func.func @transform_0(%arg0: i32) -> (i32, i32) {
    %c0_i32 = arith.constant 0 : i32
    %c0_i32_0 = arith.constant 0 : i32
    return %arg0, %c0_i32 : i32, i32
  }
  func.func @transform_1(%arg0: i32) -> (i32, i32) {
    %c0_i32 = arith.constant 0 : i32
    %c0_i32_0 = arith.constant 0 : i32
    return %arg0, %c0_i32 : i32, i32
  }
  func.func @transform_2(%arg0: i32) -> (i32, i32) {
    %c0_i32 = arith.constant 0 : i32
    %c0_i32_0 = arith.constant 0 : i32
    %c0_i32_1 = arith.constant 0 : i32
    return %c0_i32, %c0_i32_0 : i32, i32
  }
  func.func @transform_3(%arg0: i32) -> (i32, i32) {
    %c0_i32 = arith.constant 0 : i32
    %c0_i32_0 = arith.constant 0 : i32
    %c0_i32_1 = arith.constant 0 : i32
    return %c0_i32, %c0_i32_0 : i32, i32
  }
  func.func @transform_4(%arg0: i32) -> (i32, i32) {
    %c0_i32 = arith.constant 0 : i32
    %c0_i32_0 = arith.constant 0 : i32
    %c0_i32_1 = arith.constant 0 : i32
    return %c0_i32, %c0_i32_0 : i32, i32
  }
  func.func @transform_5(%arg0: i32) -> (i32, i32) {
    %c0_i32 = arith.constant 0 : i32
    %c0_i32_0 = arith.constant 0 : i32
    %c0_i32_1 = arith.constant 0 : i32
    return %c0_i32, %c0_i32_0 : i32, i32
  }
  func.func @transform_6(%arg0: i32) -> (i32, i32) {
    %c0_i32 = arith.constant 0 : i32
    %c0_i32_0 = arith.constant 0 : i32
    %c0_i32_1 = arith.constant 0 : i32
    return %c0_i32, %c0_i32_0 : i32, i32
  }
  func.func @transform_7(%arg0: i32) -> (i32, i32) {
    %c0_i32 = arith.constant 0 : i32
    %c0_i32_0 = arith.constant 0 : i32
    return %arg0, %c0_i32 : i32, i32
  }
}

</mosaic_0001>

<llo_original>
// kernel: tpu_custom_call.1
$region0: #{tpu_custom_call.1}
  #allocation0 [shape = 'u32[]', space=smem, size = 0x4, offset = 0x4, fixed_abs, tag = 'smem constant byte address 0x4 - core index']
  #allocation1 [shape = 'u32[72,128]{1,0:T(1,128)}', space=vmem, size = 0x9000, scoped, tag = 'internal scratch']
  #allocation2 [shape = 'f32[1,1]{1,0:T(1,128)S(1)}', space=vmem, size = 0x200, scoped, tag = 'scoped memory for tpu_custom_call.1']
  %s0 = inlined_call_operand.hbm [shape: f32[16,32], index: 0, kind: input, shape index: {}]
  %s1 = inlined_call_operand.hbm [shape: f32[16,32], index: 1, kind: input, shape index: {}]
  %s2 = inlined_call_operand.hbm [shape: bf16[32,128], index: 2, kind: input, shape index: {}]
  %s3 = inlined_call_operand.hbm [shape: bf16[32,128], index: 3, kind: input, shape index: {}]
  %s4 = inlined_call_operand.vmem [shape: f32[1,128], index: 4, kind: input, shape index: {}]
  %s5 = inlined_call_operand.vmem [shape: f32[1,128], index: 5, kind: input, shape index: {}]
  %s6 = inlined_call_operand.<no memory space> [shape: f32[1,1], index: 6, kind: input, shape index: {}]
  %s7 = inlined_call_operand.vmem [shape: f32[16,1], index: 7, kind: output, shape index: {}]
  %s8 = sld [smem:[#allocation0]]
  $region54: #{tpu_custom_call.1} parent=0
    _
  %s10 = ssub.s32 1, %s8
  %s11 = scalar_select 0, %s10, %s8
  %v12 = vstv %s6
  %13 = vst [vmem:[#allocation2] sm:$0x1] %v12
  $region1: #{tpu_custom_call.1} parent=0
    #allocation3 [shape = 'u8[8192]{0}', space=vmem, size = 0x2000, scoped, tag = 'input window, operand 0, single buffered']
    #allocation4 [shape = 's32[1]{0}', space=sflag, size = 0x4, scoped, tag = 'scoped memory for tpu_custom_call.1']
    #allocation5 [shape = 'u8[8192]{0}', space=vmem, size = 0x2000, scoped, tag = 'input window, operand 1, single buffered']
    #allocation6 [shape = 's32[1]{0}', space=sflag, size = 0x4, scoped, tag = 'scoped memory for tpu_custom_call.1']
    #allocation7 [shape = 'u8[8192]{0}', space=vmem, size = 0x2000, scoped, tag = 'input window, operand 2, single buffered']
    #allocation8 [shape = 'u8[8192]{0}', space=vmem, size = 0x2000, scoped, tag = 'input window, operand 3, single buffered']
    #allocation9 [shape = 's32[1]{0}', space=sflag, size = 0x4, scoped, tag = 'scoped memory for tpu_custom_call.1']
    %14 = vsyncpa [#allocation4], 0
    %15 = vsyncpa [#allocation6], 0
    %16 = vsyncpa [#allocation9], 0
    // Predicated region
    $region2: #{tpu_custom_call.1} parent=1 // pred_check
      _
    $region3: #{tpu_custom_call.1} parent=1 // pred_check_branch
      %18 = sbr.rel (0) target = $region5
    $region4: #{tpu_custom_call.1} parent=1 // pred_region
      %20 = vsyncadd [#allocation4], 0
      %s21 = sshll.u32 %s0, 4
      %s22 = int_to_ptr.hbm [resolvable:$true] %s21
      %s23 = sshll.u32 [#allocation3], 4
      %s24 = int_to_ptr.vmem [resolvable:$true] %s23
      %29 = dma.hbm_to_vmem [thread:$0]  %s22, 256, %s24, [#allocation4], 128, 128, 8
    $region5: #{tpu_custom_call.1} parent=1 // pred_fallthru
      _
    // Predicated region
    $region6: #{tpu_custom_call.1} parent=1 // pred_check
      _
    $region7: #{tpu_custom_call.1} parent=1 // pred_check_branch
      %31 = sbr.rel (0) target = $region9
    $region8: #{tpu_custom_call.1} parent=1 // pred_region
      %33 = vsyncadd [#allocation6], 0
      %s34 = sshll.u32 %s1, 4
      %s35 = int_to_ptr.hbm [resolvable:$true] %s34
      %s36 = sshll.u32 [#allocation5], 4
      %s37 = int_to_ptr.vmem [resolvable:$true] %s36
      %42 = dma.hbm_to_vmem [thread:$0]  %s35, 256, %s37, [#allocation6], 128, 128, 8
    $region9: #{tpu_custom_call.1} parent=1 // pred_fallthru
      _
    // Predicated region
    $region10: #{tpu_custom_call.1} parent=1 // pred_check
      _
    $region11: #{tpu_custom_call.1} parent=1 // pred_check_branch
      %44 = sbr.rel (0) target = $region13
    $region12: #{tpu_custom_call.1} parent=1 // pred_region
      %46 = vsyncadd [#allocation6], 0
      %s47 = sshll.u32 %s2, 4
      %s48 = int_to_ptr.hbm [resolvable:$true] %s47
      %s49 = sshll.u32 [#allocation7], 4
      %s50 = int_to_ptr.vmem [resolvable:$true] %s49
      %55 = dma.hbm_to_vmem [thread:$0]  %s48, 256, %s50, [#allocation6], 64, 64, 4
    $region13: #{tpu_custom_call.1} parent=1 // pred_fallthru
      _
    // Predicated region
    $region14: #{tpu_custom_call.1} parent=1 // pred_check
      _
    $region15: #{tpu_custom_call.1} parent=1 // pred_check_branch
      %57 = sbr.rel (0) target = $region17
    $region16: #{tpu_custom_call.1} parent=1 // pred_region
      %59 = vsyncadd [#allocation9], 0
      %s60 = sshll.u32 %s3, 4
      %s61 = int_to_ptr.hbm [resolvable:$true] %s60
      %s62 = sshll.u32 [#allocation8], 4
      %s63 = int_to_ptr.vmem [resolvable:$true] %s62
      %68 = dma.hbm_to_vmem [thread:$0]  %s61, 256, %s63, [#allocation9], 64, 64, 4
    $region17: #{tpu_custom_call.1} parent=1 // pred_fallthru
      _
    // Predicated region
    $region18: #{tpu_custom_call.1} parent=1 // pred_check
      _
    $region19: #{tpu_custom_call.1} parent=1 // pred_check_branch
      %70 = sbr.rel (0) target = $region21
    $region20: #{tpu_custom_call.1} parent=1 // pred_region
      _
    $region21: #{tpu_custom_call.1} parent=1 // pred_fallthru
      _
    // Predicated region
    $region22: #{tpu_custom_call.1} parent=1 // pred_check
      _
    $region23: #{tpu_custom_call.1} parent=1 // pred_check_branch
      %72 = sbr.rel (0) target = $region25
    $region24: #{tpu_custom_call.1} parent=1 // pred_region
      _
    $region25: #{tpu_custom_call.1} parent=1 // pred_fallthru
      _
    // Predicated region
    $region26: #{tpu_custom_call.1} parent=1 // pred_check
      _
    $region27: #{tpu_custom_call.1} parent=1 // pred_check_branch
      %74 = sbr.rel (0) target = $region29
    $region28: #{tpu_custom_call.1} parent=1 // pred_region
      _
    $region29: #{tpu_custom_call.1} parent=1 // pred_fallthru
      _
    // Predicated region
    $region30: #{tpu_custom_call.1} parent=1 // pred_check
      _
    $region31: #{tpu_custom_call.1} parent=1 // pred_check_branch
      %76 = sbr.rel (0) target = $region33
    $region32: #{tpu_custom_call.1} parent=1 // pred_region
      %78 = dma.done [#allocation4], 256
    $region33: #{tpu_custom_call.1} parent=1 // pred_fallthru
      _
    // Predicated region
    $region34: #{tpu_custom_call.1} parent=1 // pred_check
      _
    $region35: #{tpu_custom_call.1} parent=1 // pred_check_branch
      %80 = sbr.rel (0) target = $region37
    $region36: #{tpu_custom_call.1} parent=1 // pred_region
      %82 = dma.done [#allocation6], 256
    $region37: #{tpu_custom_call.1} parent=1 // pred_fallthru
      _
    // Predicated region
    $region38: #{tpu_custom_call.1} parent=1 // pred_check
      _
    $region39: #{tpu_custom_call.1} parent=1 // pred_check_branch
      %84 = sbr.rel (0) target = $region41
    $region40: #{tpu_custom_call.1} parent=1 // pred_region
      %86 = dma.done [#allocation6], 256
    $region41: #{tpu_custom_call.1} parent=1 // pred_fallthru
      _
    // Predicated region
    $region42: #{tpu_custom_call.1} parent=1 // pred_check
      _
    $region43: #{tpu_custom_call.1} parent=1 // pred_check_branch
      %88 = sbr.rel (0) target = $region45
    $region44: #{tpu_custom_call.1} parent=1 // pred_region
      %90 = dma.done [#allocation9], 256
    $region45: #{tpu_custom_call.1} parent=1 // pred_fallthru
      _
    %v92 = vld [vmem:[#allocation3] sm:$0xff]
    %v93 = vld [vmem:[#allocation3 + $0x8] sm:$0xff]
    %v94 = vpack.c.bf16 %v93, %v92
    %v95 = vld [vmem:[#allocation7] sm:$0xf]
    %v96 = vld [vmem:[#allocation7 + $0x4] sm:$0xf]
    %v97 = vld [vmem:[#allocation7 + $0x8] sm:$0xf]
    %v98 = vld [vmem:[#allocation7 + $0xc] sm:$0xf]
    %v99 = vld [vmem:[#allocation5] sm:$0xff]
    %v100 = vld [vmem:[#allocation5 + $0x8] sm:$0xff]
    %v101 = vpack.c.bf16 %v100, %v99
    %v102 = vld [vmem:[#allocation8] sm:$0xf]
    %v103 = vld [vmem:[#allocation8 + $0x4] sm:$0xf]
    %v104 = vld [vmem:[#allocation8 + $0x8] sm:$0xf]
    %v105 = vld [vmem:[#allocation8 + $0xc] sm:$0xf]
    %v110 = vunpack.c.l.b16 %v102
    %v111 = vunpack.c.l.b16 %v103
    %v112 = vunpack.c.l.b16 %v104
    %v113 = vunpack.c.l.b16 %v105
    %v114 = vpack.c.b16 %v111, %v110
    %v115 = vpack.c.b16 %v113, %v112
    %vm118 = vcmask 261120
    %v120 = vsel %vm118, %v101, 0
    %122 = vmatpush.bf16.msra.mxu0 0
    %123 = vmatpush.bf16.msra.mxu0 0
    %124 = vmatpush.bf16.msra.mxu0 0
    %125 = vmatpush.bf16.msra.mxu0 0
    %126 = vmatpush.bf16.msra.mxu0 0
    %127 = vmatpush.bf16.msra.mxu0 0
    %128 = vmatpush.bf16.msra.mxu0 %v115
    %129 = vmatpush.bf16.msra.mxu0 %v114
    %130 = vmatmul.bf16.gmra.mxu0 %v120
    %v131 = vpop.f32.mrf.mxu0
    %v132 = vadd.f32 0.0, %v131
    %v133 = vpop.f32.mrf.mxu0
    %v134 = vadd.f32 0.0, %v133
    %135 = vdwg.mxu0
    %v140 = vunpack.c.l.b16 %v95
    %v141 = vunpack.c.l.b16 %v96
    %v142 = vunpack.c.l.b16 %v97
    %v143 = vunpack.c.l.b16 %v98
    %v144 = vpack.c.b16 %v141, %v140
    %v145 = vpack.c.b16 %v143, %v142
    %v149 = vsel %vm118, %v94, 0
    %151 = vmatpush.bf16.msra.mxu0 0
    %152 = vmatpush.bf16.msra.mxu0 0
    %153 = vmatpush.bf16.msra.mxu0 0
    %154 = vmatpush.bf16.msra.mxu0 0
    %155 = vmatpush.bf16.msra.mxu0 0
    %156 = vmatpush.bf16.msra.mxu0 0
    %157 = vmatpush.bf16.msra.mxu0 %v145
    %158 = vmatpush.bf16.msra.mxu0 %v144
    %159 = vmatmul.bf16.gmra.mxu0 %v149
    %v160 = vpop.f32.mrf.mxu0
    %v161 = vadd.f32 %v132, %v160
    %v162 = vpop.f32.mrf.mxu0
    %v163 = vadd.f32 %v134, %v162
    %164 = vdwg.mxu0
    %v165 = vld [vmem:[%s4] sm:$0x1]
    %v167 = vperm.slane %v165, 0
    %v169 = vadd.f32 %v161, %v167
    %v170 = vadd.f32 %v163, %v167
    %v171 = vmax.f32 %v169, 0.0
    %v172 = vmax.f32 %v170, 0.0
    %v173 = vld [vmem:[%s5] sm:$0x1]
    %v175 = vperm.slane %v173, 0
    %v177 = vmul.f32 %v171, %v175
    %v178 = vmul.f32 %v172, %v175
    %179 = vadd.xlane.f32.xlu0 %v177
    %v180 = vpop.xlane.xlu0 %179
    %181 = vadd.xlane.f32.xlu0 %v178
    %v182 = vpop.xlane.xlu0 %181
    %v183 = vld [vmem:[#allocation2] sm:$0x1]
    %v185 = vperm.slane %v183, 0
    %v187 = vadd.f32 %v180, %v185
    %v188 = vadd.f32 %v182, %v185
    %vm189 = vcmask 7168
    %190 = vst.msk [vmem:[%s7] sm:$0xff] %vm189, %v187
    %191 = vst.msk [vmem:[%s7 + $0x8] sm:$0xff] %vm189, %v188
    // Predicated region
    $region46: #{tpu_custom_call.1} parent=1 // pred_check
      _
    $region47: #{tpu_custom_call.1} parent=1 // pred_check_branch
      %193 = sbr.rel (0) target = $region49
    $region48: #{tpu_custom_call.1} parent=1 // pred_region
      _
    $region49: #{tpu_custom_call.1} parent=1 // pred_fallthru
      _
    // Predicated region
    $region50: #{tpu_custom_call.1} parent=1 // pred_check
      _
    $region51: #{tpu_custom_call.1} parent=1 // pred_check_branch
      %195 = sbr.rel (0) target = $region53
    $region52: #{tpu_custom_call.1} parent=1 // pred_region
      _
    $region53: #{tpu_custom_call.1} parent=1 // pred_fallthru
      _
    %196 = vsyncpa [#allocation4], 1
    %197 = vsyncpa [#allocation6], 1
    %198 = vsyncpa [#allocation9], 1

</llo_original>
